<compile_context>
chip_gen: v7x
topology: tpu7x:2x2x1
jax: 0.10.0
libtpu: 0.0.40
codegen_flags: <defaults>
</compile_context>

<pallas_src>
import functools

import jax
import jax.numpy as jnp
from jax.experimental import pallas as pl
from jax.experimental.pallas import tpu as pltpu

SCALE = 100.0  # sigmoid sharpness used by compute_ecc


def _ect_points_kernel(onehot_ref, x_ref, v_ref, lin_ref, out_ref, *, b_per_block):
    # onehot_ref: [G, Nt]      f32  one-hot membership (transposed), zero on padded nodes
    # x_ref     : [Nt, D]      f32  node coordinates tile
    # v_ref     : [D, T]       f32  direction vectors
    # lin_ref   : [1, bt_blk]  f32  lin flattened over (b, t), bt = b*T + t
    # out_ref   : [G, bt_blk]  f32  resident accumulator across the node-tile axis

    @pl.when(pl.program_id(1) == 0)
    def _init():
        out_ref[...] = jnp.zeros_like(out_ref)

    # Node heights on the MXU (tiny [Nt, D] @ [D, T]).
    nh = jnp.dot(x_ref[...], v_ref[...], preferred_element_type=jnp.float32)  # [Nt, T]

    # Hoist the SCALE multiply off the big cube: scale the small operands once.
    nh_s = SCALE * nh                       # [Nt, T]
    lin_s = SCALE * lin_ref[...]            # [1, bt_blk]

    # Replicate node heights along the flattened (b, t) lane axis (bt = b*T + t),
    # giving a lane-dense [Nt, bt_blk] tile instead of a lane-sparse [B, Nt, T] cube.
    nh_bt = jnp.concatenate([nh_s] * b_per_block, axis=1)                      # [Nt, bt_blk]

    # sigmoid(lin_s - nh_bt) = 1 / (1 + exp(nh_bt - lin_s))   (exp on the EUP)
    ecc = 1.0 / (1.0 + jnp.exp(nh_bt - lin_s))                                 # [Nt, bt_blk]

    # Masked segment-sum over nodes as one MXU matmul with the one-hot matrix.
    out_ref[...] += jnp.dot(onehot_ref[...], ecc, preferred_element_type=jnp.float32)


def ect_points(x, batch_index, v, lin, num_graphs):
    """Pallas ECT for point clouds.

    x           : [N, D]  float32 node coordinates
    batch_index : [N]     int     graph id per node (values in [0, num_graphs))
    v           : [D, T]  float32 direction vectors (the movedim(-1,-2) calls in
                                  ECTLayer.__init__ and forward cancel out)
    lin         : [B]     float32 linspace(-radius, radius, bump_steps)
    returns     : [num_graphs, B, T] float32
    """
    N, D = x.shape
    Dv, T = v.shape
    assert Dv == D
    B = lin.shape[0]
    G = num_graphs

    # --- flattened (b, t) lane axis, b-major: bt = b*T + t -------------------
    BT = B * T
    b_blk = B
    # Try to split B into >= 2 lane-dense blocks (multiple of 128 lanes) so the
    # bt axis can be sharded across TensorCores on v7x.
    for nb in (2, 4, 8):
        if B % nb == 0 and ((B // nb) * T) % 128 == 0:
            b_blk = B // nb
            break
    bt_blk = b_blk * T
    n_bt_blocks = BT // bt_blk

    # --- node tiling (bounds the live [Nt, B*T] intermediate) ----------------
    if N > 256:
        node_tile = 256
        n_pad = ((N + node_tile - 1) // node_tile) * node_tile
    else:
        n_pad = ((N + 7) // 8) * 8
        node_tile = n_pad
    n_node_tiles = n_pad // node_tile

    # Padded nodes get batch id == G -> one-hot column is all zero -> no contribution.
    xf = jnp.zeros((n_pad, D), jnp.float32).at[:N].set(x.astype(jnp.float32))
    bidx = jnp.full((n_pad,), G, jnp.int32).at[:N].set(batch_index.astype(jnp.int32))
    onehot_t = (jnp.arange(G, dtype=jnp.int32)[:, None] == bidx[None, :]).astype(jnp.float32)  # [G, n_pad]
    lin_bt = jnp.repeat(lin.astype(jnp.float32), T).reshape(1, BT)  # lin_bt[0, b*T + t] = lin[b]

    kernel = functools.partial(_ect_points_kernel, b_per_block=b_blk)

    out2d = pl.pallas_call(
        kernel,
        out_shape=jax.ShapeDtypeStruct((G, BT), jnp.float32),
        grid_spec=pltpu.PrefetchScalarGridSpec(
            num_scalar_prefetch=0,
            grid=(n_bt_blocks, n_node_tiles),          # reduction (node) axis last
            in_specs=[
                pl.BlockSpec((G, node_tile), lambda j, i: (0, i)),  # onehot^T
                pl.BlockSpec((node_tile, D), lambda j, i: (i, 0)),  # x
                pl.BlockSpec((D, T), lambda j, i: (0, 0)),          # v
                pl.BlockSpec((1, bt_blk), lambda j, i: (0, j)),     # lin (flattened b,t)
            ],
            out_specs=pl.BlockSpec((G, bt_blk), lambda j, i: (0, j)),
        ),
        compiler_params=pltpu.CompilerParams(
            dimension_semantics=("parallel", "arbitrary")),
    )(onehot_t, xf, v.astype(jnp.float32), lin_bt)

    return out2d.reshape(G, B, T)


if __name__ == "__main__":
    # ECTConfig defaults: bump_steps=32, radius=1.1, ect_type='points',
    # normalized=False, fixed=True.
    G = 4                  # graphs in the batch
    nodes_per_graph = 16
    N = G * nodes_per_graph
    D = 3                  # ndims
    T = 16                 # num_thetas
    B = 32                 # bump_steps
    radius = 1.1

    key = jax.random.PRNGKey(0)
    kx, kv = jax.random.split(key)

    x = jax.random.normal(kx, (N, D), dtype=jnp.float32)
    x = x / jnp.max(jnp.linalg.norm(x, axis=1))               # keep points in the unit ball
    v = jax.random.normal(kv, (D, T), dtype=jnp.float32)
    v = v / jnp.linalg.norm(v, axis=0, keepdims=True)         # unit direction vectors
    lin = jnp.linspace(-radius, radius, B, dtype=jnp.float32)
    batch_index = jnp.repeat(jnp.arange(G, dtype=jnp.int32), nodes_per_graph)

    ect = ect_points(x, batch_index, v, lin, G)
    ect = jax.block_until_ready(ect)

    # plain-JAX reference mirroring the PyTorch forward (incl. final squeeze)
    nh = x @ v                                                           # [N, T]
    ecc = jax.nn.sigmoid(SCALE * (lin[:, None, None] - nh[None, :, :]))  # [B, N, T]
    onehot = (batch_index[:, None] == jnp.arange(G)[None, :]).astype(jnp.float32)  # [N, G]
    ref = jnp.einsum("ng,bnt->gbt", onehot, ecc)                         # [G, B, T]

    assert ect.shape == (G, B, T), ect.shape
    err = float(jnp.max(jnp.abs(ect - ref)))
    assert jnp.allclose(ect, ref, rtol=1e-3, atol=1e-3), err

    print("KERNEL_OK")
</pallas_src>

<mosaic_0001>
module attributes {stable_mosaic.version = 11 : i64} {
  func.func @_ect_points_kernel(%arg0: i32, %arg1: i32, %arg2: memref<4x64xf32, #tpu.memory_space<vmem>>, %arg3: memref<64x3xf32, #tpu.memory_space<vmem>>, %arg4: memref<3x16xf32, #tpu.memory_space<vmem>>, %arg5: memref<1x256xf32, #tpu.memory_space<vmem>>, %arg6: memref<4x256xf32, #tpu.memory_space<vmem>>) attributes {dimension_semantics = [#tpu.dimension_semantics<parallel>, #tpu.dimension_semantics<arbitrary>], iteration_bounds = array<i64: 2, 1>, scalar_prefetch = 0 : i64, scratch_operands = 0 : i64, tpu.core_type = #tpu.core_type<tc>, window_params = [{transform_indices = @transform_0, window_bounds = array<i64: 4, 64>}, {transform_indices = @transform_1, window_bounds = array<i64: 64, 3>}, {pipeline_mode = #tpu.pipeline_mode<synchronous>, transform_indices = @transform_2, window_bounds = array<i64: 3, 16>}, {transform_indices = @transform_3, window_bounds = array<i64: 1, 256>}, {transform_indices = @transform_4, window_bounds = array<i64: 4, 256>}]} {
    %c0_i32 = arith.constant 0 : i32
    %0 = arith.cmpi eq, %arg1, %c0_i32 : i32
    %1 = arith.extui %0 : i1 to i32
    %c0_i32_0 = arith.constant 0 : i32
    %2 = arith.cmpi ne, %1, %c0_i32_0 : i32
    scf.if %2 {
      %cst_17 = arith.constant 0.000000e+00 : f32
      %24 = vector.broadcast %cst_17 : f32 to vector<4x256xf32>
      %c0_18 = arith.constant 0 : index
      %c0_19 = arith.constant 0 : index
      %25 = vector.load %arg6[%c0_18, %c0_19] : memref<4x256xf32, #tpu.memory_space<vmem>>, vector<4x256xf32>
      tpu.vector_store %arg6[%c0_18, %c0_19], %24 {strides = array<i32>} : memref<4x256xf32, #tpu.memory_space<vmem>>, vector<4x256xf32>,
    } else {
    }
    %c0 = arith.constant 0 : index
    %c0_1 = arith.constant 0 : index
    %3 = vector.load %arg3[%c0, %c0_1] : memref<64x3xf32, #tpu.memory_space<vmem>>, vector<64x3xf32>
    %c0_2 = arith.constant 0 : index
    %c0_3 = arith.constant 0 : index
    %4 = vector.load %arg4[%c0_2, %c0_3] : memref<3x16xf32, #tpu.memory_space<vmem>>, vector<3x16xf32>
    %cst = arith.constant dense<0.000000e+00> : vector<64x16xf32>
    %5 = tpu.matmul %3, %4, %cst {dimension_numbers = #tpu.dot_dimension_numbers<[1], [0], [0], [1], [0, 0, 1, 1], [], []>} : vector<64x3xf32>, vector<3x16xf32>, vector<64x16xf32> -> vector<64x16xf32>
    %cst_4 = arith.constant 1.000000e+02 : f32
    %6 = vector.broadcast %cst_4 : f32 to vector<64x16xf32>
    %7 = arith.mulf %6, %5 : vector<64x16xf32>
    %c0_5 = arith.constant 0 : index
    %c0_6 = arith.constant 0 : index
    %8 = vector.load %arg5[%c0_5, %c0_6] : memref<1x256xf32, #tpu.memory_space<vmem>>, vector<1x256xf32>
    %cst_7 = arith.constant 1.000000e+02 : f32
    %9 = vector.broadcast %cst_7 : f32 to vector<1x256xf32>
    %10 = arith.mulf %9, %8 : vector<1x256xf32>
    %11 = tpu.concatenate %7, %7, %7, %7, %7, %7, %7, %7, %7, %7, %7, %7, %7, %7, %7, %7 in 1 : vector<64x16xf32>, vector<64x16xf32>, vector<64x16xf32>, vector<64x16xf32>, vector<64x16xf32>, vector<64x16xf32>, vector<64x16xf32>, vector<64x16xf32>, vector<64x16xf32>, vector<64x16xf32>, vector<64x16xf32>, vector<64x16xf32>, vector<64x16xf32>, vector<64x16xf32>, vector<64x16xf32>, vector<64x16xf32> -> vector<64x256xf32>
    %12 = vector.broadcast %10 : vector<1x256xf32> to vector<64x256xf32>
    %13 = arith.subf %11, %12 : vector<64x256xf32>
    %14 = math.exp %13 : vector<64x256xf32>
    %cst_8 = arith.constant 1.000000e+00 : f32
    %15 = vector.broadcast %cst_8 : f32 to vector<64x256xf32>
    %16 = arith.addf %15, %14 : vector<64x256xf32>
    %cst_9 = arith.constant 1.000000e+00 : f32
    %17 = vector.broadcast %cst_9 : f32 to vector<64x256xf32>
    %18 = arith.divf %17, %16 : vector<64x256xf32>
    %c0_10 = arith.constant 0 : index
    %c0_11 = arith.constant 0 : index
    %19 = vector.load %arg6[%c0_10, %c0_11] : memref<4x256xf32, #tpu.memory_space<vmem>>, vector<4x256xf32>
    %c0_12 = arith.constant 0 : index
    %c0_13 = arith.constant 0 : index
    %20 = vector.load %arg2[%c0_12, %c0_13] : memref<4x64xf32, #tpu.memory_space<vmem>>, vector<4x64xf32>
    %cst_14 = arith.constant dense<0.000000e+00> : vector<4x256xf32>
    %21 = tpu.matmul %20, %18, %cst_14 {dimension_numbers = #tpu.dot_dimension_numbers<[1], [0], [0], [1], [0, 0, 1, 1], [], []>} : vector<4x64xf32>, vector<64x256xf32>, vector<4x256xf32> -> vector<4x256xf32>
    %22 = arith.addf %19, %21 : vector<4x256xf32>
    %c0_15 = arith.constant 0 : index
    %c0_16 = arith.constant 0 : index
    %23 = vector.load %arg6[%c0_15, %c0_16] : memref<4x256xf32, #tpu.memory_space<vmem>>, vector<4x256xf32>
    tpu.vector_store %arg6[%c0_15, %c0_16], %22 {strides = array<i32>} : memref<4x256xf32, #tpu.memory_space<vmem>>, vector<4x256xf32>,
    return
  }
  func.func @transform_0(%arg0: i32, %arg1: i32) -> (i32, i32) {
    %c0_i32 = arith.constant 0 : i32
    %c0_i32_0 = arith.constant 0 : i32
    return %c0_i32, %arg1 : i32, i32
  }
  func.func @transform_1(%arg0: i32, %arg1: i32) -> (i32, i32) {
    %c0_i32 = arith.constant 0 : i32
    %c0_i32_0 = arith.constant 0 : i32
    return %arg1, %c0_i32 : i32, i32
  }
  func.func @transform_2(%arg0: i32, %arg1: i32) -> (i32, i32) {
    %c0_i32 = arith.constant 0 : i32
    %c0_i32_0 = arith.constant 0 : i32
    %c0_i32_1 = arith.constant 0 : i32
    return %c0_i32, %c0_i32_0 : i32, i32
  }
  func.func @transform_3(%arg0: i32, %arg1: i32) -> (i32, i32) {
    %c0_i32 = arith.constant 0 : i32
    %c0_i32_0 = arith.constant 0 : i32
    return %c0_i32, %arg0 : i32, i32
  }
  func.func @transform_4(%arg0: i32, %arg1: i32) -> (i32, i32) {
    %c0_i32 = arith.constant 0 : i32
    %c0_i32_0 = arith.constant 0 : i32
    return %c0_i32, %arg0 : i32, i32
  }
}

</mosaic_0001>

<llo_original>
// kernel: tpu_custom_call.1
$region0: #{tpu_custom_call.1}
  #allocation0 [shape = 'u32[]', space=smem, size = 0x4, offset = 0x4, fixed_abs, tag = 'smem constant byte address 0x4 - core index']
  #allocation1 [shape = 'u32[144,128]{1,0:T(1,128)}', space=vmem, size = 0x12000, scoped, tag = 'internal scratch']
  %s0 = inlined_call_operand.vmem [shape: f32[4,64], index: 0, kind: input, shape index: {}]
  %s1 = inlined_call_operand.vmem [shape: f32[64,3], index: 1, kind: input, shape index: {}]
  %s2 = inlined_call_operand.vmem [shape: f32[3,16], index: 2, kind: input, shape index: {}]
  %s3 = inlined_call_operand.vmem [shape: f32[1,512], index: 3, kind: input, shape index: {}]
  %s4 = inlined_call_operand.hbm [shape: f32[4,512], index: 4, kind: output, shape index: {}]
  %s5 = sld [smem:[#allocation0]]
  $region53: #{tpu_custom_call.1} parent=0
    _
  %s7 = ssub.s32 1, %s5
  %s8 = scalar_select 0, %s7, %s5
  $region1: #{tpu_custom_call.1} parent=0
    #allocation2 [shape = 'u8[8192]{0}', space=vmem, size = 0x2000, scoped, tag = 'output window, operand 0']
    #allocation3 [shape = 's32[2]{0}', space=sflag, size = 0x8, scoped, tag = 'scoped memory for tpu_custom_call.1']
    %9 = vsyncpa [#allocation3], 0
    %s10 = scalar_lea.sflag [#allocation3], 1
    %11 = vsyncpa %s10, 0
    loop: start=0, step=1, limit=4
    $region2: #{tpu_custom_call.1} parent=1 // loop_pre_header
      _
    $region3: #{tpu_custom_call.1} parent=1 // loop_header
      %s13 = sphi 0, %s17
      %p14 = scmp.ge.s32.totalorder %s13, 4
      %s20 = sphi 0, %s32
      %s21 = sphi 0, %s28
      %s22 = sphi 0, %s20
      %s23 = sphi 0, %s21
      %s24 = sphi 0, %s22
      %s25 = sphi 0, %s23
      %s35 = sphi 0, %s37
      %s38 = sphi 0, %s35
      %s39 = sphi 0, %s38
      %s55 = sphi 0, %s39
      %s61 = sphi 0, %s63
      %s64 = sphi 0, %s61
      %s65 = sphi 0, %s64
      %s81 = sphi 0, %s65
      %s85 = sphi 0, %s85
      %s87 = sphi 0, %s85
      %s88 = sphi 0, %s87
      %s102 = sphi 0, %s88
      %s108 = sphi 0, %s110
      %s111 = sphi 0, %s108
      %s112 = sphi 0, %s111
      %s128 = sphi 0, %s112
      %s134 = sphi 0, %s136
      %s137 = sphi 0, %s134
      %s138 = sphi 0, %s137
      %s154 = sphi 0, %s138
    $region4: #{tpu_custom_call.1} parent=1 // loop_header_branch
      %16 = sbr.rel (%p14) target = $region8
    $region5: #{tpu_custom_call.1} parent=1 // loop_body
      %s18 = ssub.s32 %s13, 1
      %s19 = ssub.s32 %s13, 2
      %s26 = sadd.s32 1, %s21
      %p27 = scmp.ge.s32.totalorder %s26, 1
      %s28 = scalar_select %p27, 0, %s26
      %s29 = sadd.s32 1, %s20
      %s30 = scalar_select %p27, %s29, %s20
      %p31 = scmp.ge.s32.totalorder %s30, 2
      %s32 = scalar_select %p31, 0, %s30
      %s33 = ssub.s32 %s21, %s28
      %p34 = scmp.eq.s32.totalorder %s33, 0
      %s36 = sadd.s32 %s35, 1
      %s37 = scalar_select %p34, %s35, %s36
      %p40 = pneg %p34
      %p41 = scmp.eq.s32.totalorder %s13, 1
      %p42 = por %p40, %p41
      %p43 = scmp.ne.s32.totalorder %s35, %s38
      %p44 = scmp.eq.s32.totalorder %s13, 0
      %p45 = por %p43, %p44
      %p46 = scmp.ne.s32.totalorder %s35, %s38
      %p47 = scmp.eq.s32.totalorder %s18, 1
      %p48 = por %p46, %p47
      %p49 = scmp.ne.s32.totalorder %s38, %s39
      %p50 = scmp.eq.s32.totalorder %s18, 0
      %p51 = por %p49, %p50
      %p52 = scmp.ne.s32.totalorder %s38, %s39
      %p53 = scmp.eq.s32.totalorder %s19, 1
      %p54 = por %p52, %p53
      %p56 = scmp.ne.s32.totalorder %s39, %s55
      %p57 = scmp.eq.s32.totalorder %s19, 0
      %p58 = por %p56, %p57
      %s59 = ssub.s32 %s21, %s28
      %p60 = scmp.eq.s32.totalorder %s59, 0
      %s62 = sadd.s32 %s61, 1
      %s63 = scalar_select %p60, %s61, %s62
      %p66 = pneg %p60
      %p67 = scmp.eq.s32.totalorder %s13, 1
      %p68 = por %p66, %p67
      %p69 = scmp.ne.s32.totalorder %s61, %s64
      %p70 = scmp.eq.s32.totalorder %s13, 0
      %p71 = por %p69, %p70
      %p72 = scmp.ne.s32.totalorder %s61, %s64
      %p73 = scmp.eq.s32.totalorder %s18, 1
      %p74 = por %p72, %p73
      %p75 = scmp.ne.s32.totalorder %s64, %s65
      %p76 = scmp.eq.s32.totalorder %s18, 0
      %p77 = por %p75, %p76
      %p78 = scmp.ne.s32.totalorder %s64, %s65
      %p79 = scmp.eq.s32.totalorder %s19, 1
      %p80 = por %p78, %p79
      %p82 = scmp.ne.s32.totalorder %s65, %s81
      %p83 = scmp.eq.s32.totalorder %s19, 0
      %p84 = por %p82, %p83
      %s86 = sadd.s32 %s85, 1
      %p89 = scmp.eq.s32.totalorder %s13, 1
      %p90 = scmp.ne.s32.totalorder %s85, %s87
      %p91 = scmp.eq.s32.totalorder %s13, 0
      %p92 = por %p90, %p91
      %p93 = scmp.ne.s32.totalorder %s85, %s87
      %p94 = scmp.eq.s32.totalorder %s18, 1
      %p95 = por %p93, %p94
      %p96 = scmp.ne.s32.totalorder %s87, %s88
      %p97 = scmp.eq.s32.totalorder %s18, 0
      %p98 = por %p96, %p97
      %p99 = scmp.ne.s32.totalorder %s87, %s88
      %p100 = scmp.eq.s32.totalorder %s19, 1
      %p101 = por %p99, %p100
      %p103 = scmp.ne.s32.totalorder %s88, %s102
      %p104 = scmp.eq.s32.totalorder %s19, 0
      %p105 = por %p103, %p104
      %s106 = ssub.s32 %s20, %s32
      %p107 = scmp.eq.s32.totalorder %s106, 0
      %s109 = sadd.s32 %s108, 1
      %s110 = scalar_select %p107, %s108, %s109
      %p113 = pneg %p107
      %p114 = scmp.eq.s32.totalorder %s13, 1
      %p115 = por %p113, %p114
      %p116 = scmp.ne.s32.totalorder %s108, %s111
      %p117 = scmp.eq.s32.totalorder %s13, 0
      %p118 = por %p116, %p117
      %p119 = scmp.ne.s32.totalorder %s108, %s111
      %p120 = scmp.eq.s32.totalorder %s18, 1
      %p121 = por %p119, %p120
      %p122 = scmp.ne.s32.totalorder %s111, %s112
      %p123 = scmp.eq.s32.totalorder %s18, 0
      %p124 = por %p122, %p123
      %p125 = scmp.ne.s32.totalorder %s111, %s112
      %p126 = scmp.eq.s32.totalorder %s19, 1
      %p127 = por %p125, %p126
      %p129 = scmp.ne.s32.totalorder %s112, %s128
      %p130 = scmp.eq.s32.totalorder %s19, 0
      %p131 = por %p129, %p130
      %s132 = ssub.s32 %s20, %s32
      %p133 = scmp.eq.s32.totalorder %s132, 0
      %s135 = sadd.s32 %s134, 1
      %s136 = scalar_select %p133, %s134, %s135
      %p139 = pneg %p133
      %p140 = scmp.eq.s32.totalorder %s13, 1
      %p141 = por %p139, %p140
      %p142 = scmp.ne.s32.totalorder %s134, %s137
      %p143 = scmp.eq.s32.totalorder %s13, 0
      %p144 = por %p142, %p143
      %p145 = scmp.ne.s32.totalorder %s134, %s137
      %p146 = scmp.eq.s32.totalorder %s18, 1
      %p147 = por %p145, %p146
      %p148 = scmp.ne.s32.totalorder %s137, %s138
      %p149 = scmp.eq.s32.totalorder %s18, 0
      %p150 = por %p148, %p149
      %p151 = scmp.ne.s32.totalorder %s137, %s138
      %p152 = scmp.eq.s32.totalorder %s19, 1
      %p153 = por %p151, %p152
      %p155 = scmp.ne.s32.totalorder %s138, %s154
      %p156 = scmp.eq.s32.totalorder %s19, 0
      %p157 = por %p155, %p156
      %p158 = scmp.le.s32.totalorder 1, %s13
      %p159 = scmp.lt.s32.totalorder %s13, 3
      %p160 = pnand %p158, %p159
      %p161 = pneg %p160
      // Predicated region
      $region9: #{tpu_custom_call.1} parent=5 // pred_check
        _
      $region10: #{tpu_custom_call.1} parent=5 // pred_check_branch
        %163 = sbr.rel (%p160) target = $region12
      $region11: #{tpu_custom_call.1} parent=5 // pred_region
        %s164 = ssub.s32 %s13, 1
        // Predicated region
        $region13: #{tpu_custom_call.1} parent=11 // pred_check
          %p165 = pneg %p51
        $region14: #{tpu_custom_call.1} parent=11 // pred_check_branch
          %167 = sbr.rel (%p165) target = $region16
        $region15: #{tpu_custom_call.1} parent=11 // pred_region
          %p168 = scmp.lt.s32.totalorder %s23, 0
          %s169 = scalar_select %p168, %s23, 0
          %s170 = smul.addr %s169, 4
          %s171 = scalar_lea.vmem %s0, %s170
        $region16: #{tpu_custom_call.1} parent=11 // pred_fallthru
          _
        // Predicated region
        $region17: #{tpu_custom_call.1} parent=11 // pred_check
          %p172 = pneg %p77
        $region18: #{tpu_custom_call.1} parent=11 // pred_check_branch
          %174 = sbr.rel (%p172) target = $region20
        $region19: #{tpu_custom_call.1} parent=11 // pred_region
          %s175 = smul.u32 8, %s23
          %p176 = scmp.lt.s32.totalorder %s175, 7
          %s177 = scalar_select %p176, %s175, 7
          %s178 = smul.addr %s177, 8
          %s179 = scalar_lea.vmem %s1, %s178
          %s180 = smul.u32 8, %s23
        $region20: #{tpu_custom_call.1} parent=11 // pred_fallthru
          _
        // Predicated region
        $region21: #{tpu_custom_call.1} parent=11 // pred_check
          %p181 = pneg %p98
        $region22: #{tpu_custom_call.1} parent=11 // pred_check_branch
          %183 = sbr.rel (%p181) target = $region24
        $region23: #{tpu_custom_call.1} parent=11 // pred_region
          _
        $region24: #{tpu_custom_call.1} parent=11 // pred_fallthru
          _
      $region12: #{tpu_custom_call.1} parent=5 // pred_fallthru
        _
      %p184 = scmp.lt.s32.totalorder %s13, 2
      // Predicated region
      $region25: #{tpu_custom_call.1} parent=5 // pred_check
        %p185 = pneg %p184
      $region26: #{tpu_custom_call.1} parent=5 // pred_check_branch
        %187 = sbr.rel (%p185) target = $region28
      $region27: #{tpu_custom_call.1} parent=5 // pred_region
        // Predicated region
        $region29: #{tpu_custom_call.1} parent=27 // pred_check
          %p188 = pneg %p118
        $region30: #{tpu_custom_call.1} parent=27 // pred_check_branch
          %190 = sbr.rel (%p188) target = $region32
        $region31: #{tpu_custom_call.1} parent=27 // pred_region
          %s191 = smul.u32 2, %s20
          %p192 = scmp.lt.s32.totalorder %s191, 3
          %s193 = scalar_select %p192, %s191, 3
          %s194 = scalar_lea.vmem %s3, %s193
          %s195 = smul.u32 2, %s20
        $region32: #{tpu_custom_call.1} parent=27 // pred_fallthru
          _
      $region28: #{tpu_custom_call.1} parent=5 // pred_fallthru
        _
      %p196 = scmp.le.s32.totalorder 1, %s13
      %p197 = scmp.lt.s32.totalorder %s13, 3
      %p198 = pnand %p196, %p197
      %p199 = pneg %p198
      // Predicated region
      $region33: #{tpu_custom_call.1} parent=5 // pred_check
        _
      $region34: #{tpu_custom_call.1} parent=5 // pred_check_branch
        %201 = sbr.rel (%p198) target = $region36
      $region35: #{tpu_custom_call.1} parent=5 // pred_region
        %s202 = ssub.s32 %s13, 1
        %p203 = scmp.lt.s32.totalorder %s23, 0
        %s204 = scalar_select %p203, %s23, 0
        %s205 = smul.addr %s204, 4
        %s206 = scalar_lea.vmem %s0, %s205
        %p207 = pneg %p51
        %p208 = pneg %p48
        %s209 = smul.u32 8, %s23
        %p210 = scmp.lt.s32.totalorder %s209, 7
        %s211 = scalar_select %p210, %s209, 7
        %s212 = smul.addr %s211, 8
        %s213 = scalar_lea.vmem %s1, %s212
        %p214 = pneg %p77
        %p215 = pneg %p74
        %p216 = pneg %p98
        %p217 = pneg %p95
        %s218 = smul.u32 2, %s22
        %p219 = scmp.lt.s32.totalorder %s218, 3
        %s220 = scalar_select %p219, %s218, 3
        %s221 = scalar_lea.vmem %s3, %s220
        %p222 = pneg %p124
        %p223 = pneg %p121
        %p224 = pneg %p150
        %p225 = pneg %p147
        %s226 = sand.u32 %s137, 1
        %s227 = scalar_lea.sflag [#allocation3], %s226
        %s228 = sand.u32 %s137, 1
        %s229 = smul.addr %s228, 8
        %s230 = scalar_lea.vmem [#allocation2], %s229
        %p231 = scmp.lt.s32.totalorder %s23, 0
        %s232 = scalar_select %p231, %s23, 0
        %s233 = smul.addr %s232, 4
        %s234 = scalar_lea.vmem %s0, %s233
        %s235 = smul.u32 8, %s23
        %p236 = scmp.lt.s32.totalorder %s235, 7
        %s237 = scalar_select %p236, %s235, 7
        %s238 = smul.addr %s237, 8
        %s239 = scalar_lea.vmem %s1, %s238
        %s240 = smul.u32 8, %s23
        %s241 = smul.u32 2, %s22
        %p242 = scmp.lt.s32.totalorder %s241, 3
        %s243 = scalar_select %p242, %s241, 3
        %s244 = scalar_lea.vmem %s3, %s243
        %s245 = smul.u32 2, %s22
        %s246 = smul.u32 2, %s22
        %p247 = scmp.eq.s32.totalorder %s23, 0
        // Predicated region
        $region37: #{tpu_custom_call.1} parent=35 // pred_check
          %p248 = pneg %p247
        $region38: #{tpu_custom_call.1} parent=35 // pred_check_branch
          %250 = sbr.rel (%p248) target = $region40
        $region39: #{tpu_custom_call.1} parent=35 // pred_region
          %251 = vst [vmem:[%s230] sm:$0xff] 0.0
        $region40: #{tpu_custom_call.1} parent=35 // pred_fallthru
          _
        %v252 = vld [vmem:[%s239] sm:$0xff]
        %v253 = vld [vmem:[%s239 + $0x8] sm:$0xff]
        %v254 = vld [vmem:[%s239 + $0x10] sm:$0xff]
        %v255 = vld [vmem:[%s239 + $0x18] sm:$0xff]
        %v256 = vld [vmem:[%s239 + $0x20] sm:$0xff]
        %v257 = vld [vmem:[%s239 + $0x28] sm:$0xff]
        %v258 = vld [vmem:[%s239 + $0x30] sm:$0xff]
        %v259 = vld [vmem:[%s239 + $0x38] sm:$0xff]
        %v260 = vld [vmem:[%s2] sm:$0x7]
        %vm261 = vcmask 23552
        %v263 = vsel %vm261, %v252, 0
        %v266 = vsel %vm261, %v253, 0
        %v269 = vsel %vm261, %v254, 0
        %v272 = vsel %vm261, %v255, 0
        %v275 = vsel %vm261, %v256, 0
        %v278 = vsel %vm261, %v257, 0
        %v281 = vsel %vm261, %v258, 0
        %v284 = vsel %vm261, %v259, 0
        %vm286 = vcmask 1042432
        %v288 = vsel %vm286, %v260, 0
        %290 = vmatprep.subr.mxu0 0.0
        %291 = vmatpush1.msra.mxu0 %v288
        %292 = vmatprep.subr.mxu0 0.0
        %293 = vmatpush1.msra.mxu0 0.0
        %294 = vmatprep.subr.mxu0 0.0
        %295 = vmatpush1.msra.mxu0 0.0
        %296 = vmatprep.subr.mxu0 0.0
        %297 = vmatpush1.msra.mxu0 0.0
        %298 = vmatprep.subr.mxu0 0.0
        %299 = vmatpush1.msra.mxu0 0.0
        %300 = vmatprep.subr.mxu0 0.0
        %301 = vmatpush1.msra.mxu0 0.0
        %302 = vmatprep.subr.mxu0 0.0
        %303 = vmatpush1.msra.mxu0 0.0
        %304 = vmatprep.subr.mxu0 0.0
        %305 = vmatpush1.msra.mxu0 0.0
        %306 = vmatprep.subr.mxu0 0.0
        %307 = vmatpush1.msra.mxu0 0.0
        %308 = vmatprep.subr.mxu0 0.0
        %309 = vmatpush1.msra.mxu0 0.0
        %310 = vmatprep.subr.mxu0 0.0
        %311 = vmatpush1.msra.mxu0 0.0
        %312 = vmatprep.subr.mxu0 0.0
        %313 = vmatpush1.msra.mxu0 0.0
        %314 = vmatprep.subr.mxu0 0.0
        %315 = vmatpush1.msra.mxu0 0.0
        %316 = vmatprep.subr.mxu0 0.0
        %317 = vmatpush1.msra.mxu0 0.0
        %318 = vmatprep.subr.mxu0 0.0
        %319 = vmatpush1.msra.mxu0 0.0
        %320 = vmatprep.subr.mxu0 0.0
        %321 = vmatpush1.msra.mxu0 0.0
        %322 = vmatprep.subr.mxu0 0.0
        %323 = vmatpush1.msra.mxu0 0.0
        %324 = vmatprep.subr.mxu0 0.0
        %325 = vmatpush1.msra.mxu0 0.0
        %326 = vmatprep.subr.mxu0 0.0
        %327 = vmatpush1.msra.mxu0 0.0
        %328 = vmatprep.subr.mxu0 0.0
        %329 = vmatpush1.msra.mxu0 0.0
        %330 = vmatprep.subr.mxu0 0.0
        %331 = vmatpush1.msra.mxu0 0.0
        %332 = vmatprep.subr.mxu0 0.0
        %333 = vmatpush1.msra.mxu0 0.0
        %334 = vmatprep.subr.mxu0 0.0
        %335 = vmatpush1.msra.mxu0 0.0
        %336 = vmatprep.subr.mxu0 0.0
        %337 = vmatpush1.msra.mxu0 0.0
        %338 = vmatprep.subr.mxu0 0.0
        %339 = vmatpush1.msra.mxu0 0.0
        %340 = vmatprep.subr.mxu0 0.0
        %341 = vmatpush1.msra.mxu0 0.0
        %342 = vmatprep.subr.mxu0 0.0
        %343 = vmatpush1.msra.mxu0 0.0
        %344 = vmatprep.subr.mxu0 0.0
        %345 = vmatpush1.msra.mxu0 0.0
        %346 = vmatprep.subr.mxu0 0.0
        %347 = vmatpush1.msra.mxu0 0.0
        %348 = vmatprep.subr.mxu0 0.0
        %349 = vmatpush1.msra.mxu0 0.0
        %350 = vmatprep.subr.mxu0 0.0
        %351 = vmatpush1.msra.mxu0 0.0
        %352 = vmatprep.subr.mxu0 0.0
        %353 = vmatpush1.msra.mxu0 0.0
        %354 = vmatprep.mubr.f32.mxu0 0.0
        %355 = vmatmul.mubr.f32.gmra.mrb[0].mxu0 %v263
        %v356 = vpop.f32.mrb[0].mxu0
        %v357 = vadd.f32 0.0, %v356
        %v358 = vpop.f32.mrb[0].mxu0
        %359 = vmatprep.mubr.f32.mxu0 0.0
        %360 = vmatmul.mubr.f32.gmra.mrb[0].mxu0 %v266
        %v361 = vpop.f32.mrb[0].mxu0
        %v362 = vadd.f32 0.0, %v361
        %v363 = vpop.f32.mrb[0].mxu0
        %364 = vmatprep.mubr.f32.mxu0 0.0
        %365 = vmatmul.mubr.f32.gmra.mrb[0].mxu0 %v269
        %v366 = vpop.f32.mrb[0].mxu0
        %v367 = vadd.f32 0.0, %v366
        %v368 = vpop.f32.mrb[0].mxu0
        %369 = vmatprep.mubr.f32.mxu0 0.0
        %370 = vmatmul.mubr.f32.gmra.mrb[0].mxu0 %v272
        %v371 = vpop.f32.mrb[0].mxu0
        %v372 = vadd.f32 0.0, %v371
        %v373 = vpop.f32.mrb[0].mxu0
        %374 = vmatprep.mubr.f32.mxu0 0.0
        %375 = vmatmul.mubr.f32.gmra.mrb[0].mxu0 %v275
        %v376 = vpop.f32.mrb[0].mxu0
        %v377 = vadd.f32 0.0, %v376
        %v378 = vpop.f32.mrb[0].mxu0
        %379 = vmatprep.mubr.f32.mxu0 0.0
        %380 = vmatmul.mubr.f32.gmra.mrb[0].mxu0 %v278
        %v381 = vpop.f32.mrb[0].mxu0
        %v382 = vadd.f32 0.0, %v381
        %v383 = vpop.f32.mrb[0].mxu0
        %384 = vmatprep.mubr.f32.mxu0 0.0
        %385 = vmatmul.mubr.f32.gmra.mrb[0].mxu0 %v281
        %v386 = vpop.f32.mrb[0].mxu0
        %v387 = vadd.f32 0.0, %v386
        %v388 = vpop.f32.mrb[0].mxu0
        %389 = vmatprep.mubr.f32.mxu0 0.0
        %390 = vmatmul.mubr.f32.gmra.mrb[0].mxu0 %v284
        %v391 = vpop.f32.mrb[0].mxu0
        %v392 = vadd.f32 0.0, %v391
        %v393 = vpop.f32.mrb[0].mxu0
        %394 = vdwg.mxu0
        %v395 = vmul.f32 %v357, 100.0
        %v396 = vmul.f32 %v362, 100.0
        %v397 = vmul.f32 %v367, 100.0
        %v398 = vmul.f32 %v372, 100.0
        %v399 = vmul.f32 %v377, 100.0
        %v400 = vmul.f32 %v382, 100.0
        %v401 = vmul.f32 %v387, 100.0
        %v402 = vmul.f32 %v392, 100.0
        %v403 = vld [vmem:[%s244] sm:$0x3]
        %v404 = vmul.f32 %v403, 100.0
        %413 = vrot.lane.b32.xlu0 %v395, 16
        %v414 = vpop.permute.xlu0 %413
        %415 = vrot.lane.b32.xlu0 %v396, 16
        %v416 = vpop.permute.xlu0 %415
        %417 = vrot.lane.b32.xlu0 %v397, 16
        %v418 = vpop.permute.xlu0 %417
        %419 = vrot.lane.b32.xlu0 %v398, 16
        %v420 = vpop.permute.xlu0 %419
        %421 = vrot.lane.b32.xlu0 %v399, 16
        %v422 = vpop.permute.xlu0 %421
        %423 = vrot.lane.b32.xlu0 %v400, 16
        %v424 = vpop.permute.xlu0 %423
        %425 = vrot.lane.b32.xlu0 %v401, 16
        %v426 = vpop.permute.xlu0 %425
        %427 = vrot.lane.b32.xlu0 %v402, 16
        %v428 = vpop.permute.xlu0 %427
        %437 = vrot.lane.b32.xlu0 %v395, 32
        %v438 = vpop.permute.xlu0 %437
        %439 = vrot.lane.b32.xlu0 %v396, 32
        %v440 = vpop.permute.xlu0 %439
        %441 = vrot.lane.b32.xlu0 %v397, 32
        %v442 = vpop.permute.xlu0 %441
        %443 = vrot.lane.b32.xlu0 %v398, 32
        %v444 = vpop.permute.xlu0 %443
        %445 = vrot.lane.b32.xlu0 %v399, 32
        %v446 = vpop.permute.xlu0 %445
        %447 = vrot.lane.b32.xlu0 %v400, 32
        %v448 = vpop.permute.xlu0 %447
        %449 = vrot.lane.b32.xlu0 %v401, 32
        %v450 = vpop.permute.xlu0 %449
        %451 = vrot.lane.b32.xlu0 %v402, 32
        %v452 = vpop.permute.xlu0 %451
        %461 = vrot.lane.b32.xlu0 %v395, 48
        %v462 = vpop.permute.xlu0 %461
        %463 = vrot.lane.b32.xlu0 %v396, 48
        %v464 = vpop.permute.xlu0 %463
        %465 = vrot.lane.b32.xlu0 %v397, 48
        %v466 = vpop.permute.xlu0 %465
        %467 = vrot.lane.b32.xlu0 %v398, 48
        %v468 = vpop.permute.xlu0 %467
        %469 = vrot.lane.b32.xlu0 %v399, 48
        %v470 = vpop.permute.xlu0 %469
        %471 = vrot.lane.b32.xlu0 %v400, 48
        %v472 = vpop.permute.xlu0 %471
        %473 = vrot.lane.b32.xlu0 %v401, 48
        %v474 = vpop.permute.xlu0 %473
        %475 = vrot.lane.b32.xlu0 %v402, 48
        %v476 = vpop.permute.xlu0 %475
        %485 = vrot.lane.b32.xlu0 %v395, 64
        %v486 = vpop.permute.xlu0 %485
        %487 = vrot.lane.b32.xlu0 %v396, 64
        %v488 = vpop.permute.xlu0 %487
        %489 = vrot.lane.b32.xlu0 %v397, 64
        %v490 = vpop.permute.xlu0 %489
        %491 = vrot.lane.b32.xlu0 %v398, 64
        %v492 = vpop.permute.xlu0 %491
        %493 = vrot.lane.b32.xlu0 %v399, 64
        %v494 = vpop.permute.xlu0 %493
        %495 = vrot.lane.b32.xlu0 %v400, 64
        %v496 = vpop.permute.xlu0 %495
        %497 = vrot.lane.b32.xlu0 %v401, 64
        %v498 = vpop.permute.xlu0 %497
        %499 = vrot.lane.b32.xlu0 %v402, 64
        %v500 = vpop.permute.xlu0 %499
        %509 = vrot.lane.b32.xlu0 %v395, 80
        %v510 = vpop.permute.xlu0 %509
        %511 = vrot.lane.b32.xlu0 %v396, 80
        %v512 = vpop.permute.xlu0 %511
        %513 = vrot.lane.b32.xlu0 %v397, 80
        %v514 = vpop.permute.xlu0 %513
        %515 = vrot.lane.b32.xlu0 %v398, 80
        %v516 = vpop.permute.xlu0 %515
        %517 = vrot.lane.b32.xlu0 %v399, 80
        %v518 = vpop.permute.xlu0 %517
        %519 = vrot.lane.b32.xlu0 %v400, 80
        %v520 = vpop.permute.xlu0 %519
        %521 = vrot.lane.b32.xlu0 %v401, 80
        %v522 = vpop.permute.xlu0 %521
        %523 = vrot.lane.b32.xlu0 %v402, 80
        %v524 = vpop.permute.xlu0 %523
        %533 = vrot.lane.b32.xlu0 %v395, 96
        %v534 = vpop.permute.xlu0 %533
        %535 = vrot.lane.b32.xlu0 %v396, 96
        %v536 = vpop.permute.xlu0 %535
        %537 = vrot.lane.b32.xlu0 %v397, 96
        %v538 = vpop.permute.xlu0 %537
        %539 = vrot.lane.b32.xlu0 %v398, 96
        %v540 = vpop.permute.xlu0 %539
        %541 = vrot.lane.b32.xlu0 %v399, 96
        %v542 = vpop.permute.xlu0 %541
        %543 = vrot.lane.b32.xlu0 %v400, 96
        %v544 = vpop.permute.xlu0 %543
        %545 = vrot.lane.b32.xlu0 %v401, 96
        %v546 = vpop.permute.xlu0 %545
        %547 = vrot.lane.b32.xlu0 %v402, 96
        %v548 = vpop.permute.xlu0 %547
        %557 = vrot.lane.b32.xlu0 %v395, 112
        %v558 = vpop.permute.xlu0 %557
        %559 = vrot.lane.b32.xlu0 %v396, 112
        %v560 = vpop.permute.xlu0 %559
        %561 = vrot.lane.b32.xlu0 %v397, 112
        %v562 = vpop.permute.xlu0 %561
        %563 = vrot.lane.b32.xlu0 %v398, 112
        %v564 = vpop.permute.xlu0 %563
        %565 = vrot.lane.b32.xlu0 %v399, 112
        %v566 = vpop.permute.xlu0 %565
        %567 = vrot.lane.b32.xlu0 %v400, 112
        %v568 = vpop.permute.xlu0 %567
        %569 = vrot.lane.b32.xlu0 %v401, 112
        %v570 = vpop.permute.xlu0 %569
        %571 = vrot.lane.b32.xlu0 %v402, 112
        %v572 = vpop.permute.xlu0 %571
        %vm581 = vcmask 130048
        %v582 = vsel %vm581, %v395, %v414
        %v583 = vsel %vm581, %v396, %v416
        %v584 = vsel %vm581, %v397, %v418
        %v585 = vsel %vm581, %v398, %v420
        %v586 = vsel %vm581, %v399, %v422
        %v587 = vsel %vm581, %v400, %v424
        %v588 = vsel %vm581, %v401, %v426
        %v589 = vsel %vm581, %v402, %v428
        %vm590 = vcmask 261120
        %v591 = vsel %vm590, %v582, %v438
        %v592 = vsel %vm590, %v583, %v440
        %v593 = vsel %vm590, %v584, %v442
        %v594 = vsel %vm590, %v585, %v444
        %v595 = vsel %vm590, %v586, %v446
        %v596 = vsel %vm590, %v587, %v448
        %v597 = vsel %vm590, %v588, %v450
        %v598 = vsel %vm590, %v589, %v452
        %vm599 = vcmask 392192
        %v600 = vsel %vm599, %v591, %v462
        %v601 = vsel %vm599, %v592, %v464
        %v602 = vsel %vm599, %v593, %v466
        %v603 = vsel %vm599, %v594, %v468
        %v604 = vsel %vm599, %v595, %v470
        %v605 = vsel %vm599, %v596, %v472
        %v606 = vsel %vm599, %v597, %v474
        %v607 = vsel %vm599, %v598, %v476
        %vm608 = vcmask 523264
        %v609 = vsel %vm608, %v600, %v486
        %v610 = vsel %vm608, %v601, %v488
        %v611 = vsel %vm608, %v602, %v490
        %v612 = vsel %vm608, %v603, %v492
        %v613 = vsel %vm608, %v604, %v494
        %v614 = vsel %vm608, %v605, %v496
        %v615 = vsel %vm608, %v606, %v498
        %v616 = vsel %vm608, %v607, %v500
        %vm617 = vcmask 654336
        %v618 = vsel %vm617, %v609, %v510
        %v619 = vsel %vm617, %v610, %v512
        %v620 = vsel %vm617, %v611, %v514
        %v621 = vsel %vm617, %v612, %v516
        %v622 = vsel %vm617, %v613, %v518
        %v623 = vsel %vm617, %v614, %v520
        %v624 = vsel %vm617, %v615, %v522
        %v625 = vsel %vm617, %v616, %v524
        %vm626 = vcmask 785408
        %v627 = vsel %vm626, %v618, %v534
        %v628 = vsel %vm626, %v619, %v536
        %v629 = vsel %vm626, %v620, %v538
        %v630 = vsel %vm626, %v621, %v540
        %v631 = vsel %vm626, %v622, %v542
        %v632 = vsel %vm626, %v623, %v544
        %v633 = vsel %vm626, %v624, %v546
        %v634 = vsel %vm626, %v625, %v548
        %vm635 = vcmask 916480
        %v636 = vsel %vm635, %v627, %v558
        %v637 = vsel %vm635, %v628, %v560
        %v638 = vsel %vm635, %v629, %v562
        %v639 = vsel %vm635, %v630, %v564
        %v640 = vsel %vm635, %v631, %v566
        %v641 = vsel %vm635, %v632, %v568
        %v642 = vsel %vm635, %v633, %v570
        %v643 = vsel %vm635, %v634, %v572
        %v645 = vlaneseq
        %v646 = vshrl.u32 %v645, 7
        %v647 = vsub.s32 0, %v646
        %v648 = vrot.slane %v404, %v647
        %v649 = vlaneseq
        %v650 = vshrl.u32 %v649, 7
        %v651 = vsub.s32 1, %v650
        %v652 = vrot.slane %v404, %v651
        %v655 = vsub.f32 %v636, %v648
        %v656 = vsub.f32 %v636, %v652
        %v657 = vsub.f32 %v637, %v648
        %v658 = vsub.f32 %v637, %v652
        %v659 = vsub.f32 %v638, %v648
        %v660 = vsub.f32 %v638, %v652
        %v661 = vsub.f32 %v639, %v648
        %v662 = vsub.f32 %v639, %v652
        %v663 = vsub.f32 %v640, %v648
        %v664 = vsub.f32 %v640, %v652
        %v665 = vsub.f32 %v641, %v648
        %v666 = vsub.f32 %v641, %v652
        %v667 = vsub.f32 %v642, %v648
        %v668 = vsub.f32 %v642, %v652
        %v669 = vsub.f32 %v643, %v648
        %v670 = vsub.f32 %v643, %v652
        %v671 = vmul.f32 %v655, 1.442695
        %v672 = vpow.pop %v671
        %v673 = vmul.f32 %v656, 1.442695
        %v674 = vpow.pop %v673
        %v675 = vmul.f32 %v657, 1.442695
        %v676 = vpow.pop %v675
        %v677 = vmul.f32 %v658, 1.442695
        %v678 = vpow.pop %v677
        %v679 = vmul.f32 %v659, 1.442695
        %v680 = vpow.pop %v679
        %v681 = vmul.f32 %v660, 1.442695
        %v682 = vpow.pop %v681
        %v683 = vmul.f32 %v661, 1.442695
        %v684 = vpow.pop %v683
        %v685 = vmul.f32 %v662, 1.442695
        %v686 = vpow.pop %v685
        %v687 = vmul.f32 %v663, 1.442695
        %v688 = vpow.pop %v687
        %v689 = vmul.f32 %v664, 1.442695
        %v690 = vpow.pop %v689
        %v691 = vmul.f32 %v665, 1.442695
        %v692 = vpow.pop %v691
        %v693 = vmul.f32 %v666, 1.442695
        %v694 = vpow.pop %v693
        %v695 = vmul.f32 %v667, 1.442695
        %v696 = vpow.pop %v695
        %v697 = vmul.f32 %v668, 1.442695
        %v698 = vpow.pop %v697
        %v699 = vmul.f32 %v669, 1.442695
        %v700 = vpow.pop %v699
        %v701 = vmul.f32 %v670, 1.442695
        %v702 = vpow.pop %v701
        %v703 = vadd.f32 %v672, 1.0
        %v704 = vadd.f32 %v674, 1.0
        %v705 = vadd.f32 %v676, 1.0
        %v706 = vadd.f32 %v678, 1.0
        %v707 = vadd.f32 %v680, 1.0
        %v708 = vadd.f32 %v682, 1.0
        %v709 = vadd.f32 %v684, 1.0
        %v710 = vadd.f32 %v686, 1.0
        %v711 = vadd.f32 %v688, 1.0
        %v712 = vadd.f32 %v690, 1.0
        %v713 = vadd.f32 %v692, 1.0
        %v714 = vadd.f32 %v694, 1.0
        %v715 = vadd.f32 %v696, 1.0
        %v716 = vadd.f32 %v698, 1.0
        %v717 = vadd.f32 %v700, 1.0
        %v718 = vadd.f32 %v702, 1.0
        %v719 = vrcp.pop %v703
        %v720 = vmul.f32 1.0, %v719
        %v721 = vrcp.pop %v704
        %v722 = vmul.f32 1.0, %v721
        %v723 = vrcp.pop %v705
        %v724 = vmul.f32 1.0, %v723
        %v725 = vrcp.pop %v706
        %v726 = vmul.f32 1.0, %v725
        %v727 = vrcp.pop %v707
        %v728 = vmul.f32 1.0, %v727
        %v729 = vrcp.pop %v708
        %v730 = vmul.f32 1.0, %v729
        %v731 = vrcp.pop %v709
        %v732 = vmul.f32 1.0, %v731
        %v733 = vrcp.pop %v710
        %v734 = vmul.f32 1.0, %v733
        %v735 = vrcp.pop %v711
        %v736 = vmul.f32 1.0, %v735
        %v737 = vrcp.pop %v712
        %v738 = vmul.f32 1.0, %v737
        %v739 = vrcp.pop %v713
        %v740 = vmul.f32 1.0, %v739
        %v741 = vrcp.pop %v714
        %v742 = vmul.f32 1.0, %v741
        %v743 = vrcp.pop %v715
        %v744 = vmul.f32 1.0, %v743
        %v745 = vrcp.pop %v716
        %v746 = vmul.f32 1.0, %v745
        %v747 = vrcp.pop %v717
        %v748 = vmul.f32 1.0, %v747
        %v749 = vrcp.pop %v718
        %v750 = vmul.f32 1.0, %v749
        %v751 = vld [vmem:[%s230] sm:$0xff]
        %v752 = vld [vmem:[%s234] sm:$0xf]
        %v754 = vsel %vm608, %v752, 0
        %756 = vmatprep.subr.mxu0 %v722
        %757 = vmatpush1.msra.mxu0 %v720
        %758 = vmatprep.subr.mxu0 %v726
        %759 = vmatpush1.msra.mxu0 %v724
        %760 = vmatprep.subr.mxu0 %v730
        %761 = vmatpush1.msra.mxu0 %v728
        %762 = vmatprep.subr.mxu0 %v734
        %763 = vmatpush1.msra.mxu0 %v732
        %764 = vmatprep.subr.mxu0 %v738
        %765 = vmatpush1.msra.mxu0 %v736
        %766 = vmatprep.subr.mxu0 %v742
        %767 = vmatpush1.msra.mxu0 %v740
        %768 = vmatprep.subr.mxu0 %v746
        %769 = vmatpush1.msra.mxu0 %v744
        %770 = vmatprep.subr.mxu0 %v750
        %771 = vmatpush1.msra.mxu0 %v748
        %772 = vmatprep.subr.mxu0 0.0
        %773 = vmatpush1.msra.mxu0 0.0
        %774 = vmatprep.subr.mxu0 0.0
        %775 = vmatpush1.msra.mxu0 0.0
        %776 = vmatprep.subr.mxu0 0.0
        %777 = vmatpush1.msra.mxu0 0.0
        %778 = vmatprep.subr.mxu0 0.0
        %779 = vmatpush1.msra.mxu0 0.0
        %780 = vmatprep.subr.mxu0 0.0
        %781 = vmatpush1.msra.mxu0 0.0
        %782 = vmatprep.subr.mxu0 0.0
        %783 = vmatpush1.msra.mxu0 0.0
        %784 = vmatprep.subr.mxu0 0.0
        %785 = vmatpush1.msra.mxu0 0.0
        %786 = vmatprep.subr.mxu0 0.0
        %787 = vmatpush1.msra.mxu0 0.0
        %788 = vmatprep.subr.mxu0 0.0
        %789 = vmatpush1.msra.mxu0 0.0
        %790 = vmatprep.subr.mxu0 0.0
        %791 = vmatpush1.msra.mxu0 0.0
        %792 = vmatprep.subr.mxu0 0.0
        %793 = vmatpush1.msra.mxu0 0.0
        %794 = vmatprep.subr.mxu0 0.0
        %795 = vmatpush1.msra.mxu0 0.0
        %796 = vmatprep.subr.mxu0 0.0
        %797 = vmatpush1.msra.mxu0 0.0
        %798 = vmatprep.subr.mxu0 0.0
        %799 = vmatpush1.msra.mxu0 0.0
        %800 = vmatprep.subr.mxu0 0.0
        %801 = vmatpush1.msra.mxu0 0.0
        %802 = vmatprep.subr.mxu0 0.0
        %803 = vmatpush1.msra.mxu0 0.0
        %804 = vmatprep.subr.mxu0 0.0
        %805 = vmatpush1.msra.mxu0 0.0
        %806 = vmatprep.subr.mxu0 0.0
        %807 = vmatpush1.msra.mxu0 0.0
        %808 = vmatprep.subr.mxu0 0.0
        %809 = vmatpush1.msra.mxu0 0.0
        %810 = vmatprep.subr.mxu0 0.0
        %811 = vmatpush1.msra.mxu0 0.0
        %812 = vmatprep.subr.mxu0 0.0
        %813 = vmatpush1.msra.mxu0 0.0
        %814 = vmatprep.subr.mxu0 0.0
        %815 = vmatpush1.msra.mxu0 0.0
        %816 = vmatprep.subr.mxu0 0.0
        %817 = vmatpush1.msra.mxu0 0.0
        %818 = vmatprep.subr.mxu0 0.0
        %819 = vmatpush1.msra.mxu0 0.0
        %820 = vmatprep.mubr.f32.mxu0 0.0
        %821 = vmatmul.mubr.f32.gmra.mrb[0].mxu0 %v754
        %v822 = vpop.f32.mrb[0].mxu0
        %v823 = vadd.f32 0.0, %v822
        %v824 = vpop.f32.mrb[0].mxu0
        %v825 = vadd.f32 0.0, %v824
        %826 = vdwg.mxu0
        %v829 = vcombine.low %v823, %v825
        %v831 = vadd.f32 %v751, %v829
        %832 = vst [vmem:[%s230] sm:$0xff] %v831
        %s833 = sand.u32 %s137, 1
        %s834 = scalar_lea.sflag [#allocation3], %s833
        %s835 = sand.u32 %s137, 1
        %s836 = smul.addr %s835, 8
        %s837 = scalar_lea.vmem [#allocation2], %s836
        // Predicated region
        $region41: #{tpu_custom_call.1} parent=35 // pred_check
          %p838 = pneg %p147
        $region42: #{tpu_custom_call.1} parent=35 // pred_check_branch
          %840 = sbr.rel (%p838) target = $region44
        $region43: #{tpu_custom_call.1} parent=35 // pred_region
          %s841 = smul.u32 2, %s22
          %s843 = ssub.s32 128, 128
          %844 = vsyncadd %s834, %s843
          %s845 = smul.addr %s841, 64
          %s846 = scalar_lea.hbm %s4, %s845
          %s848 = sshll.u32 %s837, 4
          %s849 = int_to_ptr.vmem [resolvable:$true] %s848
          %851 = dma.vmem_to_hbm [thread:$0]  %s849, 128, %s846, %s834
        $region44: #{tpu_custom_call.1} parent=35 // pred_fallthru
          _
      $region36: #{tpu_custom_call.1} parent=5 // pred_fallthru
        _
      %p852 = scmp.le.s32.totalorder 2, %s13
      // Predicated region
      $region45: #{tpu_custom_call.1} parent=5 // pred_check
        %p853 = pneg %p852
      $region46: #{tpu_custom_call.1} parent=5 // pred_check_branch
        %855 = sbr.rel (%p853) target = $region48
      $region47: #{tpu_custom_call.1} parent=5 // pred_region
        %s856 = ssub.s32 %s13, 2
        // Predicated region
        $region49: #{tpu_custom_call.1} parent=47 // pred_check
          %p857 = pneg %p153
        $region50: #{tpu_custom_call.1} parent=47 // pred_check_branch
          %859 = sbr.rel (%p857) target = $region52
        $region51: #{tpu_custom_call.1} parent=47 // pred_region
          %s860 = sand.u32 %s138, 1
          %s861 = scalar_lea.sflag [#allocation3], %s860
          %s862 = sand.u32 %s138, 1
          %s863 = smul.addr %s862, 8
          %s864 = scalar_lea.vmem [#allocation2], %s863
          %865 = dma.done %s861, 128
        $region52: #{tpu_custom_call.1} parent=47 // pred_fallthru
          _
      $region48: #{tpu_custom_call.1} parent=5 // pred_fallthru
        _
    $region6: #{tpu_custom_call.1} parent=1 // loop_footer
      %s17 = sadd.s32 1, %s13
    $region7: #{tpu_custom_call.1} parent=1 // loop_footer_branch
      %12 = sbr.rel target = $region3
    $region8: #{tpu_custom_call.1} parent=1 // loop_exit
      _
    %866 = vsyncpa [#allocation3], 1
    %s867 = scalar_lea.sflag [#allocation3], 1
    %868 = vsyncpa %s867, 1

</llo_original>
